<compile_context>
chip_gen: v5e
topology: v5e:2x2
jax: 0.10.0
libtpu: 0.0.40
codegen_flags: <defaults>
</compile_context>

<pallas_src>
import functools
import math

import jax
import jax.numpy as jnp
from jax.experimental import pallas as pl
from jax.experimental.pallas import tpu as pltpu


def _linear_block_kernel(x_ref, w1_ref, w2_ref, avg_ref, g_ref, b_ref, o_ref, *, eps):
    # x_ref  : (tile, P*C_in)      packed row tile (P logical rows / 128-lane row)
    # w1_ref : (P*C_in, P*hidden)  block-diagonal first Linear weight (no bias)
    # w2_ref : (P*hidden, P*C_out) block-diagonal second Linear weight (no bias)
    # avg_ref: (P*C_out, P*C_out)  block-diagonal averaging matrix (1/C_out blocks)
    # g_ref  : (1, P*C_out)        LayerNorm gamma, repeated per packed segment
    # b_ref  : (1, P*C_out)        LayerNorm beta,  repeated per packed segment
    x = x_ref[...]

    # Linear 1 (MXU, f32 accumulate). Native-dtype operands keep the fast bf16
    # MXU path if the caller ever supplies bf16 weights/activations.
    h = jnp.dot(x, w1_ref[...], preferred_element_type=jnp.float32)

    # GELU, exact erf form (matches nn.GELU() default).
    h = 0.5 * h * (1.0 + jax.lax.erf(h * (1.0 / math.sqrt(2.0))))

    # Linear 2 (MXU).
    y = jnp.dot(h.astype(w2_ref.dtype), w2_ref[...], preferred_element_type=jnp.float32)

    # LayerNorm over each C_out-lane segment.  Segment mean / variance are
    # computed with MXU matmuls against the block-diagonal averaging matrix so
    # the data never leaves the lane-dense layout (no cross-lane reduction,
    # no sublane relayout).
    avg = avg_ref[...]
    mean = jnp.dot(y, avg, preferred_element_type=jnp.float32)
    centered = y - mean
    var = jnp.dot(centered * centered, avg, preferred_element_type=jnp.float32)
    out = centered * jax.lax.rsqrt(var + eps)
    out = out * g_ref[...].astype(jnp.float32) + b_ref[...].astype(jnp.float32)

    o_ref[...] = out.astype(o_ref.dtype)


def _round_down(v, m):
    return (v // m) * m


def _round_up(v, m):
    return ((v + m - 1) // m) * m


def _pick_row_tile(n_rows, requested):
    """Pick an (8,128)-legal tile over PACKED rows.

    Single full-extent block if the request covers everything; otherwise a
    multiple of 8.  When cheap, nudge the grid to an even number of steps so
    v7x's two TensorCores stay load-balanced (harmless on v5e/v6e).
    """
    if requested >= n_rows:
        return n_rows
    tile = max(8, _round_down(requested, 8))
    steps = pl.cdiv(n_rows, tile)
    if steps > 1 and steps % 2 == 1:
        cand = _round_up(pl.cdiv(n_rows, steps + 1), 8)
        if cand >= 256 and pl.cdiv(n_rows, cand) % 2 == 0:
            tile = cand
    return tile


def linear_block(x, w1, w2, gamma, beta, *, eps=1e-5, row_tile=4096):
    """x: (..., C_in) channels-last. Returns (..., C_out).

    row_tile counts PACKED (128-lane) rows.  Sweep guidance:
      v5e/v6e: 2048-4096 packed rows; v7x: 4096-8192 packed rows.
    """
    in_channels = x.shape[-1]
    hidden = w1.shape[1]
    out_channels = w2.shape[1]
    assert w1.shape == (in_channels, hidden)
    assert w2.shape == (hidden, out_channels)

    lead_shape = x.shape[:-1]
    n_rows = math.prod(lead_shape) if lead_shape else 1

    # Lane-dense packing factor: PACK logical rows per physical 128-lane row.
    lane = 128
    cmax = max(in_channels, out_channels)
    pack = lane // cmax if (cmax < lane and lane % cmax == 0) else 1

    x2d = x.reshape(n_rows, in_channels)
    n_pad = (-n_rows) % pack
    if n_pad:
        # Rare path (row count not a multiple of PACK): pad a few zero rows so
        # the lane-dense reshape is exact; sliced off after the kernel.
        x2d = jnp.concatenate(
            [x2d, jnp.zeros((n_pad, in_channels), x2d.dtype)], axis=0)
    n_packed = (n_rows + n_pad) // pack

    pc_in, pc_hid, pc_out = pack * in_channels, pack * hidden, pack * out_channels
    xp = x2d.reshape(n_packed, pc_in)

    # Block-diagonal weights / averaging matrix.  Tiny (<=256 KiB total);
    # constant-folds under jit when the weights are constants, otherwise a
    # negligible per-call cost (callers can hoist if desired).
    w1_bd = jnp.kron(jnp.eye(pack, dtype=w1.dtype), w1)              # (pc_in, pc_hid)
    w2_bd = jnp.kron(jnp.eye(pack, dtype=w2.dtype), w2)              # (pc_hid, pc_out)
    avg = jnp.kron(jnp.eye(pack, dtype=jnp.float32),
                   jnp.full((out_channels, out_channels),
                            1.0 / out_channels, jnp.float32))        # (pc_out, pc_out)
    g_p = jnp.tile(gamma.reshape(1, out_channels), (1, pack))        # (1, pc_out)
    b_p = jnp.tile(beta.reshape(1, out_channels), (1, pack))         # (1, pc_out)

    tile = _pick_row_tile(n_packed, row_tile)
    grid = pl.cdiv(n_packed, tile)   # partial last block masked by Pallas (no pad/slice)

    kernel = functools.partial(_linear_block_kernel, eps=eps)

    itemsize = jnp.dtype(x.dtype).itemsize
    cost = pl.CostEstimate(
        flops=2 * n_rows * (in_channels * hidden + hidden * out_channels)
        + 4 * n_packed * pc_out * pc_out,                 # segment-stat matmuls
        transcendentals=n_rows * hidden,                  # erf
        bytes_accessed=n_rows * (in_channels + out_channels) * itemsize
        + (in_channels * hidden + hidden * out_channels)
        * jnp.dtype(w1.dtype).itemsize,
    )

    out_p = pl.pallas_call(
        kernel,
        out_shape=jax.ShapeDtypeStruct((n_packed, pc_out), x.dtype),
        grid_spec=pltpu.PrefetchScalarGridSpec(
            num_scalar_prefetch=0,
            grid=(grid,),
            in_specs=[
                pl.BlockSpec((tile, pc_in), lambda i: (i, 0)),
                pl.BlockSpec((pc_in, pc_hid), lambda i: (0, 0)),
                pl.BlockSpec((pc_hid, pc_out), lambda i: (0, 0)),
                pl.BlockSpec((pc_out, pc_out), lambda i: (0, 0)),
                pl.BlockSpec((1, pc_out), lambda i: (0, 0)),
                pl.BlockSpec((1, pc_out), lambda i: (0, 0)),
            ],
            out_specs=pl.BlockSpec((tile, pc_out), lambda i: (i, 0)),
        ),
        compiler_params=pltpu.CompilerParams(
            dimension_semantics=("parallel",),
            # 48 MiB: headroom for tile sweeps up to ~8192 packed rows while
            # staying inside v7x's 64 MiB physical VMEM (v5e/v6e: 128 MiB).
            vmem_limit_bytes=48 * 1024 * 1024,
        ),
        cost_estimate=cost,
    )(xp, w1_bd, w2_bd, avg, g_p, b_p)

    out2d = out_p.reshape(n_packed * pack, out_channels)
    if n_pad:
        out2d = out2d[:n_rows]
    return out2d.reshape(*lead_shape, out_channels)


def _reference(x, w1, w2, gamma, beta, eps=1e-5):
    h = x.astype(jnp.float32) @ w1.astype(jnp.float32)
    h = jax.nn.gelu(h, approximate=False)
    y = h @ w2.astype(jnp.float32)
    mean = jnp.mean(y, axis=-1, keepdims=True)
    var = jnp.mean(jnp.square(y - mean), axis=-1, keepdims=True)
    yn = (y - mean) / jnp.sqrt(var + eps)
    return (yn * gamma + beta).astype(x.dtype)


if __name__ == "__main__":
    # Module config: LinearBlock(in_channels=32, out_channels=32, rate=2)
    in_channels, out_channels, rate = 32, 32, 2
    hidden = in_channels * rate
    batch, seq = 2, 8

    key = jax.random.PRNGKey(0)
    kx, k1, k2, k3 = jax.random.split(key, 4)

    # PyTorch Linear stores (out, in); we keep the transposed (in, out) layout
    # so the kernel computes x @ W directly.
    bound1 = 1.0 / math.sqrt(in_channels)
    bound2 = 1.0 / math.sqrt(hidden)
    w1 = jax.random.uniform(k1, (in_channels, hidden), jnp.float32, -bound1, bound1)
    w2 = jax.random.uniform(k2, (hidden, out_channels), jnp.float32, -bound2, bound2)
    gamma = jnp.ones((out_channels,), jnp.float32)   # nn.LayerNorm default affine
    beta = jnp.zeros((out_channels,), jnp.float32)

    # Case 1: 16 rows (divisible by PACK=4) -> 4 packed rows, single block.
    x = jax.random.normal(kx, (batch, seq, in_channels), dtype=jnp.float32)
    out = jax.block_until_ready(linear_block(x, w1, w2, gamma, beta))
    ref = _reference(x, w1, w2, gamma, beta)
    assert out.shape == (batch, seq, out_channels)
    assert jnp.allclose(out, ref, atol=2e-5, rtol=1e-5), \
        f"case1 max abs err {jnp.max(jnp.abs(out - ref))}"

    # Case 2: 65 rows (NOT a multiple of PACK -> pad path) with a forced 8-row
    # packed tile -> 17 packed rows, grid of 3 with a partial last block
    # (exercises the padless partial-block masking in the grid).
    x2 = jax.random.normal(k3, (5, 13, in_channels), dtype=jnp.float32)
    out2 = jax.block_until_ready(linear_block(x2, w1, w2, gamma, beta, row_tile=8))
    ref2 = _reference(x2, w1, w2, gamma, beta)
    assert out2.shape == (5, 13, out_channels)
    assert jnp.allclose(out2, ref2, atol=2e-5, rtol=1e-5), \
        f"case2 max abs err {jnp.max(jnp.abs(out2 - ref2))}"

    print("KERNEL_OK")
</pallas_src>

<mosaic_0001>
module attributes {stable_mosaic.version = 11 : i64} {
  func.func @_linear_block_kernel(%arg0: i32, %arg1: memref<4x128xf32, #tpu.memory_space<vmem>>, %arg2: memref<128x256xf32, #tpu.memory_space<vmem>>, %arg3: memref<256x128xf32, #tpu.memory_space<vmem>>, %arg4: memref<128x128xf32, #tpu.memory_space<vmem>>, %arg5: memref<1x128xf32, #tpu.memory_space<vmem>>, %arg6: memref<1x128xf32, #tpu.memory_space<vmem>>, %arg7: memref<4x128xf32, #tpu.memory_space<vmem>>) attributes {dimension_semantics = [#tpu.dimension_semantics<parallel>], iteration_bounds = array<i64: 1>, scalar_prefetch = 0 : i64, scratch_operands = 0 : i64, tpu.core_type = #tpu.core_type<tc>, window_params = [{transform_indices = @transform_0, window_bounds = array<i64: 4, 128>}, {pipeline_mode = #tpu.pipeline_mode<synchronous>, transform_indices = @transform_1, window_bounds = array<i64: 128, 256>}, {pipeline_mode = #tpu.pipeline_mode<synchronous>, transform_indices = @transform_2, window_bounds = array<i64: 256, 128>}, {pipeline_mode = #tpu.pipeline_mode<synchronous>, transform_indices = @transform_3, window_bounds = array<i64: 128, 128>}, {pipeline_mode = #tpu.pipeline_mode<synchronous>, transform_indices = @transform_4, window_bounds = array<i64: 1, 128>}, {pipeline_mode = #tpu.pipeline_mode<synchronous>, transform_indices = @transform_5, window_bounds = array<i64: 1, 128>}, {transform_indices = @transform_6, window_bounds = array<i64: 4, 128>}]} {
    %c0 = arith.constant 0 : index
    %c0_0 = arith.constant 0 : index
    %0 = vector.load %arg1[%c0, %c0_0] : memref<4x128xf32, #tpu.memory_space<vmem>>, vector<4x128xf32>
    %c0_1 = arith.constant 0 : index
    %c0_2 = arith.constant 0 : index
    %1 = vector.load %arg2[%c0_1, %c0_2] : memref<128x256xf32, #tpu.memory_space<vmem>>, vector<128x256xf32>
    %cst = arith.constant dense<0.000000e+00> : vector<4x256xf32>
    %2 = tpu.matmul %0, %1, %cst {dimension_numbers = #tpu.dot_dimension_numbers<[1], [0], [0], [1], [0, 0, 1, 1], [], []>} : vector<4x128xf32>, vector<128x256xf32>, vector<4x256xf32> -> vector<4x256xf32>
    %cst_3 = arith.constant 5.000000e-01 : f32
    %3 = vector.broadcast %cst_3 : f32 to vector<4x256xf32>
    %4 = arith.mulf %3, %2 : vector<4x256xf32>
    %cst_4 = arith.constant 0.707106769 : f32
    %5 = vector.broadcast %cst_4 : f32 to vector<4x256xf32>
    %6 = arith.mulf %2, %5 : vector<4x256xf32>
    %7 = math.erf %6 : vector<4x256xf32>
    %cst_5 = arith.constant 1.000000e+00 : f32
    %8 = vector.broadcast %cst_5 : f32 to vector<4x256xf32>
    %9 = arith.addf %8, %7 : vector<4x256xf32>
    %10 = arith.mulf %4, %9 : vector<4x256xf32>
    %c0_6 = arith.constant 0 : index
    %c0_7 = arith.constant 0 : index
    %11 = vector.load %arg3[%c0_6, %c0_7] : memref<256x128xf32, #tpu.memory_space<vmem>>, vector<256x128xf32>
    %cst_8 = arith.constant dense<0.000000e+00> : vector<4x128xf32>
    %12 = tpu.matmul %10, %11, %cst_8 {dimension_numbers = #tpu.dot_dimension_numbers<[1], [0], [0], [1], [0, 0, 1, 1], [], []>} : vector<4x256xf32>, vector<256x128xf32>, vector<4x128xf32> -> vector<4x128xf32>
    %c0_9 = arith.constant 0 : index
    %c0_10 = arith.constant 0 : index
    %13 = vector.load %arg4[%c0_9, %c0_10] : memref<128x128xf32, #tpu.memory_space<vmem>>, vector<128x128xf32>
    %cst_11 = arith.constant dense<0.000000e+00> : vector<4x128xf32>
    %14 = tpu.matmul %12, %13, %cst_11 {dimension_numbers = #tpu.dot_dimension_numbers<[1], [0], [0], [1], [0, 0, 1, 1], [], []>} : vector<4x128xf32>, vector<128x128xf32>, vector<4x128xf32> -> vector<4x128xf32>
    %15 = arith.subf %12, %14 : vector<4x128xf32>
    %16 = arith.mulf %15, %15 : vector<4x128xf32>
    %cst_12 = arith.constant dense<0.000000e+00> : vector<4x128xf32>
    %17 = tpu.matmul %16, %13, %cst_12 {dimension_numbers = #tpu.dot_dimension_numbers<[1], [0], [0], [1], [0, 0, 1, 1], [], []>} : vector<4x128xf32>, vector<128x128xf32>, vector<4x128xf32> -> vector<4x128xf32>
    %cst_13 = arith.constant 9.99999974E-6 : f32
    %18 = vector.broadcast %cst_13 : f32 to vector<4x128xf32>
    %19 = arith.addf %17, %18 : vector<4x128xf32>
    %20 = math.rsqrt %19 : vector<4x128xf32>
    %21 = arith.mulf %15, %20 : vector<4x128xf32>
    %c0_14 = arith.constant 0 : index
    %c0_15 = arith.constant 0 : index
    %22 = vector.load %arg5[%c0_14, %c0_15] : memref<1x128xf32, #tpu.memory_space<vmem>>, vector<1x128xf32>
    %23 = vector.broadcast %22 : vector<1x128xf32> to vector<4x128xf32>
    %24 = arith.mulf %21, %23 : vector<4x128xf32>
    %c0_16 = arith.constant 0 : index
    %c0_17 = arith.constant 0 : index
    %25 = vector.load %arg6[%c0_16, %c0_17] : memref<1x128xf32, #tpu.memory_space<vmem>>, vector<1x128xf32>
    %26 = vector.broadcast %25 : vector<1x128xf32> to vector<4x128xf32>
    %27 = arith.addf %24, %26 : vector<4x128xf32>
    %c0_18 = arith.constant 0 : index
    %c0_19 = arith.constant 0 : index
    %28 = vector.load %arg7[%c0_18, %c0_19] : memref<4x128xf32, #tpu.memory_space<vmem>>, vector<4x128xf32>
    tpu.vector_store %arg7[%c0_18, %c0_19], %27 {strides = array<i32>} : memref<4x128xf32, #tpu.memory_space<vmem>>, vector<4x128xf32>,
    return
  }
  func.func @transform_0(%arg0: i32) -> (i32, i32) {
    %c0_i32 = arith.constant 0 : i32
    %c0_i32_0 = arith.constant 0 : i32
    return %arg0, %c0_i32 : i32, i32
  }
  func.func @transform_1(%arg0: i32) -> (i32, i32) {
    %c0_i32 = arith.constant 0 : i32
    %c0_i32_0 = arith.constant 0 : i32
    %c0_i32_1 = arith.constant 0 : i32
    return %c0_i32, %c0_i32_0 : i32, i32
  }
  func.func @transform_2(%arg0: i32) -> (i32, i32) {
    %c0_i32 = arith.constant 0 : i32
    %c0_i32_0 = arith.constant 0 : i32
    %c0_i32_1 = arith.constant 0 : i32
    return %c0_i32, %c0_i32_0 : i32, i32
  }
  func.func @transform_3(%arg0: i32) -> (i32, i32) {
    %c0_i32 = arith.constant 0 : i32
    %c0_i32_0 = arith.constant 0 : i32
    %c0_i32_1 = arith.constant 0 : i32
    return %c0_i32, %c0_i32_0 : i32, i32
  }
  func.func @transform_4(%arg0: i32) -> (i32, i32) {
    %c0_i32 = arith.constant 0 : i32
    %c0_i32_0 = arith.constant 0 : i32
    %c0_i32_1 = arith.constant 0 : i32
    return %c0_i32, %c0_i32_0 : i32, i32
  }
  func.func @transform_5(%arg0: i32) -> (i32, i32) {
    %c0_i32 = arith.constant 0 : i32
    %c0_i32_0 = arith.constant 0 : i32
    %c0_i32_1 = arith.constant 0 : i32
    return %c0_i32, %c0_i32_0 : i32, i32
  }
  func.func @transform_6(%arg0: i32) -> (i32, i32) {
    %c0_i32 = arith.constant 0 : i32
    %c0_i32_0 = arith.constant 0 : i32
    return %arg0, %c0_i32 : i32, i32
  }
}

</mosaic_0001>

<llo_original>
// kernel: tpu_custom_call.1
$region0: #{tpu_custom_call.1}
  #allocation0 [shape = 'u32[]', space=smem, size = 0x4, offset = 0x4, fixed_abs, tag = 'smem constant byte address 0x4 - core index']
  #allocation1 [shape = 'u32[72,128]{1,0:T(1,128)}', space=vmem, size = 0x9000, scoped, tag = 'internal scratch']
  %s0 = inlined_call_operand.hbm [shape: f32[4,128], index: 0, kind: input, shape index: {}]
  %s1 = inlined_call_operand.hbm [shape: f32[128,256], index: 1, kind: input, shape index: {}]
  %s2 = inlined_call_operand.hbm [shape: f32[256,128], index: 2, kind: input, shape index: {}]
  %s3 = inlined_call_operand.hbm [shape: f32[128,128], index: 3, kind: input, shape index: {}]
  %s4 = inlined_call_operand.vmem [shape: f32[1,128], index: 4, kind: input, shape index: {}]
  %s5 = inlined_call_operand.vmem [shape: f32[1,128], index: 5, kind: input, shape index: {}]
  %s6 = inlined_call_operand.hbm [shape: f32[4,128], index: 6, kind: output, shape index: {}]
  %s7 = sld [smem:[#allocation0]]
  $region50: #{tpu_custom_call.1} parent=0
    _
  %s9 = ssub.s32 1, %s7
  %s10 = scalar_select 0, %s9, %s7
  $region1: #{tpu_custom_call.1} parent=0
    #allocation2 [shape = 'u8[2048]{0}', space=vmem, size = 0x800, scoped, tag = 'input window, operand 0, single buffered']
    #allocation3 [shape = 's32[1]{0}', space=sflag, size = 0x4, scoped, tag = 'scoped memory for tpu_custom_call.1']
    #allocation4 [shape = 's32[1]{0}', space=sflag, size = 0x4, scoped, tag = 'scoped memory for tpu_custom_call.1']
    #allocation5 [shape = 'u8[131072]{0}', space=vmem, size = 0x20000, scoped, tag = 'input window, operand 1, single buffered']
    #allocation6 [shape = 's32[1]{0}', space=sflag, size = 0x4, scoped, tag = 'scoped memory for tpu_custom_call.1']
    #allocation7 [shape = 'u8[131072]{0}', space=vmem, size = 0x20000, scoped, tag = 'input window, operand 2, single buffered']
    #allocation8 [shape = 'u8[65536]{0}', space=vmem, size = 0x10000, scoped, tag = 'input window, operand 3, single buffered']
    #allocation9 [shape = 's32[1]{0}', space=sflag, size = 0x4, scoped, tag = 'scoped memory for tpu_custom_call.1']
    #allocation10 [shape = 'u8[2048]{0}', space=vmem, size = 0x800, scoped, tag = 'output window, operand 0, single buffered']
    %11 = vsyncpa [#allocation3], 0
    %12 = vsyncpa [#allocation6], 0
    %13 = vsyncpa [#allocation9], 0
    %14 = vsyncpa [#allocation4], 0
    // Predicated region
    $region2: #{tpu_custom_call.1} parent=1 // pred_check
      _
    $region3: #{tpu_custom_call.1} parent=1 // pred_check_branch
      %16 = sbr.rel (0) target = $region5
    $region4: #{tpu_custom_call.1} parent=1 // pred_region
      %18 = vsyncadd [#allocation3], 0
      %s20 = sshll.u32 %s0, 4
      %s21 = int_to_ptr.hbm [resolvable:$true] %s20
      %s22 = sshll.u32 [#allocation2], 4
      %s23 = int_to_ptr.vmem [resolvable:$true] %s22
      %25 = dma.hbm_to_vmem [thread:$0]  %s21, 64, %s23, [#allocation3]
    $region5: #{tpu_custom_call.1} parent=1 // pred_fallthru
      _
    // Predicated region
    $region6: #{tpu_custom_call.1} parent=1 // pred_check
      _
    $region7: #{tpu_custom_call.1} parent=1 // pred_check_branch
      %27 = sbr.rel (0) target = $region9
    $region8: #{tpu_custom_call.1} parent=1 // pred_region
      %29 = vsyncadd [#allocation6], 0
      %s30 = sshll.u32 %s1, 4
      %s31 = int_to_ptr.hbm [resolvable:$true] %s30
      %s32 = sshll.u32 [#allocation5], 4
      %s33 = int_to_ptr.vmem [resolvable:$true] %s32
      %38 = dma.hbm_to_vmem [thread:$0]  %s31, 4096, %s33, [#allocation6], 256, 256, 16
    $region9: #{tpu_custom_call.1} parent=1 // pred_fallthru
      _
    // Predicated region
    $region10: #{tpu_custom_call.1} parent=1 // pred_check
      _
    $region11: #{tpu_custom_call.1} parent=1 // pred_check_branch
      %40 = sbr.rel (0) target = $region13
    $region12: #{tpu_custom_call.1} parent=1 // pred_region
      %42 = vsyncadd [#allocation6], 0
      %s43 = sshll.u32 %s2, 4
      %s44 = int_to_ptr.hbm [resolvable:$true] %s43
      %s45 = sshll.u32 [#allocation7], 4
      %s46 = int_to_ptr.vmem [resolvable:$true] %s45
      %51 = dma.hbm_to_vmem [thread:$0]  %s44, 4096, %s46, [#allocation6], 128, 128, 8
    $region13: #{tpu_custom_call.1} parent=1 // pred_fallthru
      _
    // Predicated region
    $region14: #{tpu_custom_call.1} parent=1 // pred_check
      _
    $region15: #{tpu_custom_call.1} parent=1 // pred_check_branch
      %53 = sbr.rel (0) target = $region17
    $region16: #{tpu_custom_call.1} parent=1 // pred_region
      %55 = vsyncadd [#allocation9], 0
      %s56 = sshll.u32 %s3, 4
      %s57 = int_to_ptr.hbm [resolvable:$true] %s56
      %s58 = sshll.u32 [#allocation8], 4
      %s59 = int_to_ptr.vmem [resolvable:$true] %s58
      %64 = dma.hbm_to_vmem [thread:$0]  %s57, 2048, %s59, [#allocation9], 128, 128, 8
    $region17: #{tpu_custom_call.1} parent=1 // pred_fallthru
      _
    // Predicated region
    $region18: #{tpu_custom_call.1} parent=1 // pred_check
      _
    $region19: #{tpu_custom_call.1} parent=1 // pred_check_branch
      %66 = sbr.rel (0) target = $region21
    $region20: #{tpu_custom_call.1} parent=1 // pred_region
      _
    $region21: #{tpu_custom_call.1} parent=1 // pred_fallthru
      _
    // Predicated region
    $region22: #{tpu_custom_call.1} parent=1 // pred_check
      _
    $region23: #{tpu_custom_call.1} parent=1 // pred_check_branch
      %68 = sbr.rel (0) target = $region25
    $region24: #{tpu_custom_call.1} parent=1 // pred_region
      _
    $region25: #{tpu_custom_call.1} parent=1 // pred_fallthru
      _
    // Predicated region
    $region26: #{tpu_custom_call.1} parent=1 // pred_check
      _
    $region27: #{tpu_custom_call.1} parent=1 // pred_check_branch
      %70 = sbr.rel (0) target = $region29
    $region28: #{tpu_custom_call.1} parent=1 // pred_region
      %72 = dma.done [#allocation3], 64
    $region29: #{tpu_custom_call.1} parent=1 // pred_fallthru
      _
    // Predicated region
    $region30: #{tpu_custom_call.1} parent=1 // pred_check
      _
    $region31: #{tpu_custom_call.1} parent=1 // pred_check_branch
      %74 = sbr.rel (0) target = $region33
    $region32: #{tpu_custom_call.1} parent=1 // pred_region
      %76 = dma.done [#allocation6], 4096
    $region33: #{tpu_custom_call.1} parent=1 // pred_fallthru
      _
    // Predicated region
    $region34: #{tpu_custom_call.1} parent=1 // pred_check
      _
    $region35: #{tpu_custom_call.1} parent=1 // pred_check_branch
      %78 = sbr.rel (0) target = $region37
    $region36: #{tpu_custom_call.1} parent=1 // pred_region
      %80 = dma.done [#allocation6], 4096
    $region37: #{tpu_custom_call.1} parent=1 // pred_fallthru
      _
    // Predicated region
    $region38: #{tpu_custom_call.1} parent=1 // pred_check
      _
    $region39: #{tpu_custom_call.1} parent=1 // pred_check_branch
      %82 = sbr.rel (0) target = $region41
    $region40: #{tpu_custom_call.1} parent=1 // pred_region
      %84 = dma.done [#allocation9], 2048
    $region41: #{tpu_custom_call.1} parent=1 // pred_fallthru
      _
    %v85 = vld [vmem:[#allocation2] sm:$0xf]
    %v86 = vld [vmem:[#allocation5] sm:$0xff]
    %v87 = vld [vmem:[#allocation5 + $0x8] sm:$0xff]
    %v88 = vld [vmem:[#allocation5 + $0x10] sm:$0xff]
    %v89 = vld [vmem:[#allocation5 + $0x18] sm:$0xff]
    %v90 = vld [vmem:[#allocation5 + $0x20] sm:$0xff]
    %v91 = vld [vmem:[#allocation5 + $0x28] sm:$0xff]
    %v92 = vld [vmem:[#allocation5 + $0x30] sm:$0xff]
    %v93 = vld [vmem:[#allocation5 + $0x38] sm:$0xff]
    %v94 = vld [vmem:[#allocation5 + $0x40] sm:$0xff]
    %v95 = vld [vmem:[#allocation5 + $0x48] sm:$0xff]
    %v96 = vld [vmem:[#allocation5 + $0x50] sm:$0xff]
    %v97 = vld [vmem:[#allocation5 + $0x58] sm:$0xff]
    %v98 = vld [vmem:[#allocation5 + $0x60] sm:$0xff]
    %v99 = vld [vmem:[#allocation5 + $0x68] sm:$0xff]
    %v100 = vld [vmem:[#allocation5 + $0x70] sm:$0xff]
    %v101 = vld [vmem:[#allocation5 + $0x78] sm:$0xff]
    %v102 = vld [vmem:[#allocation5 + $0x80] sm:$0xff]
    %v103 = vld [vmem:[#allocation5 + $0x88] sm:$0xff]
    %v104 = vld [vmem:[#allocation5 + $0x90] sm:$0xff]
    %v105 = vld [vmem:[#allocation5 + $0x98] sm:$0xff]
    %v106 = vld [vmem:[#allocation5 + $0xa0] sm:$0xff]
    %v107 = vld [vmem:[#allocation5 + $0xa8] sm:$0xff]
    %v108 = vld [vmem:[#allocation5 + $0xb0] sm:$0xff]
    %v109 = vld [vmem:[#allocation5 + $0xb8] sm:$0xff]
    %v110 = vld [vmem:[#allocation5 + $0xc0] sm:$0xff]
    %v111 = vld [vmem:[#allocation5 + $0xc8] sm:$0xff]
    %v112 = vld [vmem:[#allocation5 + $0xd0] sm:$0xff]
    %v113 = vld [vmem:[#allocation5 + $0xd8] sm:$0xff]
    %v114 = vld [vmem:[#allocation5 + $0xe0] sm:$0xff]
    %v115 = vld [vmem:[#allocation5 + $0xe8] sm:$0xff]
    %v116 = vld [vmem:[#allocation5 + $0xf0] sm:$0xff]
    %v117 = vld [vmem:[#allocation5 + $0xf8] sm:$0xff]
    %118 = vmatpush.msra.mxu0 %v116
    %119 = vmatpush.msra.mxu0 %v114
    %120 = vmatpush.msra.mxu0 %v112
    %121 = vmatpush.msra.mxu0 %v110
    %122 = vmatpush.msra.mxu0 %v108
    %123 = vmatpush.msra.mxu0 %v106
    %124 = vmatpush.msra.mxu0 %v104
    %125 = vmatpush.msra.mxu0 %v102
    %126 = vmatpush.msra.mxu0 %v100
    %127 = vmatpush.msra.mxu0 %v98
    %128 = vmatpush.msra.mxu0 %v96
    %129 = vmatpush.msra.mxu0 %v94
    %130 = vmatpush.msra.mxu0 %v92
    %131 = vmatpush.msra.mxu0 %v90
    %132 = vmatpush.msra.mxu0 %v88
    %133 = vmatpush.msra.mxu0 %v86
    %134 = vmatmul.f32.gmra.mxu0 %v85
    %v135 = vpop.f32.mrf.mxu0
    %v136 = vadd.f32 0.0, %v135
    %137 = vdwg.mxu0
    %138 = vmatpush.msra.mxu0 %v117
    %139 = vmatpush.msra.mxu0 %v115
    %140 = vmatpush.msra.mxu0 %v113
    %141 = vmatpush.msra.mxu0 %v111
    %142 = vmatpush.msra.mxu0 %v109
    %143 = vmatpush.msra.mxu0 %v107
    %144 = vmatpush.msra.mxu0 %v105
    %145 = vmatpush.msra.mxu0 %v103
    %146 = vmatpush.msra.mxu0 %v101
    %147 = vmatpush.msra.mxu0 %v99
    %148 = vmatpush.msra.mxu0 %v97
    %149 = vmatpush.msra.mxu0 %v95
    %150 = vmatpush.msra.mxu0 %v93
    %151 = vmatpush.msra.mxu0 %v91
    %152 = vmatpush.msra.mxu0 %v89
    %153 = vmatpush.msra.mxu0 %v87
    %154 = vmatmul.f32.gmra.mxu0 %v85
    %v155 = vpop.f32.mrf.mxu0
    %v156 = vadd.f32 0.0, %v155
    %157 = vdwg.mxu0
    %v158 = vmul.f32 %v136, 0.5
    %v159 = vmul.f32 %v156, 0.5
    %v160 = vmul.f32 %v136, 0.70710677
    %v161 = vmul.f32 %v156, 0.70710677
    %v162 = vmul.f32 %v160, %v160
    %v163 = vmin.f32 16.0, %v162
    %v164 = vmul.f32 %v163, 2.1237322e-06
    %v165 = vadd.f32 %v164, 0.00028619796
    %v166 = vmul.f32 %v163, %v165
    %v167 = vadd.f32 %v166, 0.0036580483
    %v168 = vmul.f32 %v163, %v167
    %v169 = vadd.f32 %v168, 0.05243302
    %v170 = vmul.f32 %v163, %v169
    %v171 = vadd.f32 %v170, 0.18741608
    %v172 = vmul.f32 %v163, %v171
    %v173 = vadd.f32 %v172, 1.1283791
    %v174 = vmul.f32 %v160, %v173
    %v175 = vmul.f32 %v163, 3.8918573e-05
    %v176 = vadd.f32 %v175, 0.001143296
    %v177 = vmul.f32 %v163, %v176
    %v178 = vadd.f32 %v177, 0.014752088
    %v179 = vmul.f32 %v163, %v178
    %v180 = vadd.f32 %v179, 0.112945676
    %v181 = vmul.f32 %v163, %v180
    %v182 = vadd.f32 %v181, 0.4994258
    %v183 = vmul.f32 %v163, %v182
    %v184 = vadd.f32 %v183, 1.0
    %v185 = vrcp.pop %v184
    %v186 = vmul.f32 %v184, %v185
    %v187 = vsub.f32 1.0, %v186
    %v188 = vmul.f32 %v185, %v187
    %v189 = vadd.f32 %v185, %v188
    %vm190 = vweird.f32 %v184
    %vm191 = vweird.f32 %v185
    %vm192 = vmor %vm190, %vm191
    %v193 = vsel %vm192, %v185, %v189
    %v194 = vand.u32 2147483647, %v184
    %vm195 = vcmp.eq.f32.partialorder %v194, 8.507059e+37
    %v196 = vand.u32 %v184, 2147483648
    %v197 = vor.u32 1.1754944e-38, %v196
    %v198 = vsel %vm195, %v197, %v193
    %v199 = vmul.f32 %v174, %v198
    %v200 = vmin.f32 %v199, 1.0
    %v201 = vmax.f32 %v200, -1.0
    %v202 = vmul.f32 %v161, %v161
    %v203 = vmin.f32 16.0, %v202
    %v204 = vmul.f32 %v203, 2.1237322e-06
    %v205 = vadd.f32 %v204, 0.00028619796
    %v206 = vmul.f32 %v203, %v205
    %v207 = vadd.f32 %v206, 0.0036580483
    %v208 = vmul.f32 %v203, %v207
    %v209 = vadd.f32 %v208, 0.05243302
    %v210 = vmul.f32 %v203, %v209
    %v211 = vadd.f32 %v210, 0.18741608
    %v212 = vmul.f32 %v203, %v211
    %v213 = vadd.f32 %v212, 1.1283791
    %v214 = vmul.f32 %v161, %v213
    %v215 = vmul.f32 %v203, 3.8918573e-05
    %v216 = vadd.f32 %v215, 0.001143296
    %v217 = vmul.f32 %v203, %v216
    %v218 = vadd.f32 %v217, 0.014752088
    %v219 = vmul.f32 %v203, %v218
    %v220 = vadd.f32 %v219, 0.112945676
    %v221 = vmul.f32 %v203, %v220
    %v222 = vadd.f32 %v221, 0.4994258
    %v223 = vmul.f32 %v203, %v222
    %v224 = vadd.f32 %v223, 1.0
    %v225 = vrcp.pop %v224
    %v226 = vmul.f32 %v224, %v225
    %v227 = vsub.f32 1.0, %v226
    %v228 = vmul.f32 %v225, %v227
    %v229 = vadd.f32 %v225, %v228
    %vm230 = vweird.f32 %v224
    %vm231 = vweird.f32 %v225
    %vm232 = vmor %vm230, %vm231
    %v233 = vsel %vm232, %v225, %v229
    %v234 = vand.u32 2147483647, %v224
    %vm235 = vcmp.eq.f32.partialorder %v234, 8.507059e+37
    %v236 = vand.u32 %v224, 2147483648
    %v237 = vor.u32 1.1754944e-38, %v236
    %v238 = vsel %vm235, %v237, %v233
    %v239 = vmul.f32 %v214, %v238
    %v240 = vmin.f32 %v239, 1.0
    %v241 = vmax.f32 %v240, -1.0
    %v242 = vadd.f32 %v201, 1.0
    %v243 = vadd.f32 %v241, 1.0
    %v244 = vmul.f32 %v158, %v242
    %v245 = vmul.f32 %v159, %v243
    %v246 = vld [vmem:[#allocation7] sm:$0xff]
    %v247 = vld [vmem:[#allocation7 + $0x8] sm:$0xff]
    %v248 = vld [vmem:[#allocation7 + $0x10] sm:$0xff]
    %v249 = vld [vmem:[#allocation7 + $0x18] sm:$0xff]
    %v250 = vld [vmem:[#allocation7 + $0x20] sm:$0xff]
    %v251 = vld [vmem:[#allocation7 + $0x28] sm:$0xff]
    %v252 = vld [vmem:[#allocation7 + $0x30] sm:$0xff]
    %v253 = vld [vmem:[#allocation7 + $0x38] sm:$0xff]
    %v254 = vld [vmem:[#allocation7 + $0x40] sm:$0xff]
    %v255 = vld [vmem:[#allocation7 + $0x48] sm:$0xff]
    %v256 = vld [vmem:[#allocation7 + $0x50] sm:$0xff]
    %v257 = vld [vmem:[#allocation7 + $0x58] sm:$0xff]
    %v258 = vld [vmem:[#allocation7 + $0x60] sm:$0xff]
    %v259 = vld [vmem:[#allocation7 + $0x68] sm:$0xff]
    %v260 = vld [vmem:[#allocation7 + $0x70] sm:$0xff]
    %v261 = vld [vmem:[#allocation7 + $0x78] sm:$0xff]
    %v262 = vld [vmem:[#allocation7 + $0x80] sm:$0xff]
    %v263 = vld [vmem:[#allocation7 + $0x88] sm:$0xff]
    %v264 = vld [vmem:[#allocation7 + $0x90] sm:$0xff]
    %v265 = vld [vmem:[#allocation7 + $0x98] sm:$0xff]
    %v266 = vld [vmem:[#allocation7 + $0xa0] sm:$0xff]
    %v267 = vld [vmem:[#allocation7 + $0xa8] sm:$0xff]
    %v268 = vld [vmem:[#allocation7 + $0xb0] sm:$0xff]
    %v269 = vld [vmem:[#allocation7 + $0xb8] sm:$0xff]
    %v270 = vld [vmem:[#allocation7 + $0xc0] sm:$0xff]
    %v271 = vld [vmem:[#allocation7 + $0xc8] sm:$0xff]
    %v272 = vld [vmem:[#allocation7 + $0xd0] sm:$0xff]
    %v273 = vld [vmem:[#allocation7 + $0xd8] sm:$0xff]
    %v274 = vld [vmem:[#allocation7 + $0xe0] sm:$0xff]
    %v275 = vld [vmem:[#allocation7 + $0xe8] sm:$0xff]
    %v276 = vld [vmem:[#allocation7 + $0xf0] sm:$0xff]
    %v277 = vld [vmem:[#allocation7 + $0xf8] sm:$0xff]
    %278 = vmatpush.msra.mxu0 %v261
    %279 = vmatpush.msra.mxu0 %v260
    %280 = vmatpush.msra.mxu0 %v259
    %281 = vmatpush.msra.mxu0 %v258
    %282 = vmatpush.msra.mxu0 %v257
    %283 = vmatpush.msra.mxu0 %v256
    %284 = vmatpush.msra.mxu0 %v255
    %285 = vmatpush.msra.mxu0 %v254
    %286 = vmatpush.msra.mxu0 %v253
    %287 = vmatpush.msra.mxu0 %v252
    %288 = vmatpush.msra.mxu0 %v251
    %289 = vmatpush.msra.mxu0 %v250
    %290 = vmatpush.msra.mxu0 %v249
    %291 = vmatpush.msra.mxu0 %v248
    %292 = vmatpush.msra.mxu0 %v247
    %293 = vmatpush.msra.mxu0 %v246
    %294 = vmatmul.f32.gmra.mxu0 %v244
    %v295 = vpop.f32.mrf.mxu0
    %v296 = vadd.f32 0.0, %v295
    %297 = vdwg.mxu0
    %298 = vmatpush.msra.mxu0 %v277
    %299 = vmatpush.msra.mxu0 %v276
    %300 = vmatpush.msra.mxu0 %v275
    %301 = vmatpush.msra.mxu0 %v274
    %302 = vmatpush.msra.mxu0 %v273
    %303 = vmatpush.msra.mxu0 %v272
    %304 = vmatpush.msra.mxu0 %v271
    %305 = vmatpush.msra.mxu0 %v270
    %306 = vmatpush.msra.mxu0 %v269
    %307 = vmatpush.msra.mxu0 %v268
    %308 = vmatpush.msra.mxu0 %v267
    %309 = vmatpush.msra.mxu0 %v266
    %310 = vmatpush.msra.mxu0 %v265
    %311 = vmatpush.msra.mxu0 %v264
    %312 = vmatpush.msra.mxu0 %v263
    %313 = vmatpush.msra.mxu0 %v262
    %314 = vmatmul.f32.gmra.mxu0 %v245
    %v315 = vpop.f32.mrf.mxu0
    %v316 = vadd.f32 %v296, %v315
    %317 = vdwg.mxu0
    %v318 = vld [vmem:[#allocation8] sm:$0xff]
    %v319 = vld [vmem:[#allocation8 + $0x8] sm:$0xff]
    %v320 = vld [vmem:[#allocation8 + $0x10] sm:$0xff]
    %v321 = vld [vmem:[#allocation8 + $0x18] sm:$0xff]
    %v322 = vld [vmem:[#allocation8 + $0x20] sm:$0xff]
    %v323 = vld [vmem:[#allocation8 + $0x28] sm:$0xff]
    %v324 = vld [vmem:[#allocation8 + $0x30] sm:$0xff]
    %v325 = vld [vmem:[#allocation8 + $0x38] sm:$0xff]
    %v326 = vld [vmem:[#allocation8 + $0x40] sm:$0xff]
    %v327 = vld [vmem:[#allocation8 + $0x48] sm:$0xff]
    %v328 = vld [vmem:[#allocation8 + $0x50] sm:$0xff]
    %v329 = vld [vmem:[#allocation8 + $0x58] sm:$0xff]
    %v330 = vld [vmem:[#allocation8 + $0x60] sm:$0xff]
    %v331 = vld [vmem:[#allocation8 + $0x68] sm:$0xff]
    %v332 = vld [vmem:[#allocation8 + $0x70] sm:$0xff]
    %v333 = vld [vmem:[#allocation8 + $0x78] sm:$0xff]
    %334 = vmatpush.msra.mxu0 %v333
    %335 = vmatpush.msra.mxu0 %v332
    %336 = vmatpush.msra.mxu0 %v331
    %337 = vmatpush.msra.mxu0 %v330
    %338 = vmatpush.msra.mxu0 %v329
    %339 = vmatpush.msra.mxu0 %v328
    %340 = vmatpush.msra.mxu0 %v327
    %341 = vmatpush.msra.mxu0 %v326
    %342 = vmatpush.msra.mxu0 %v325
    %343 = vmatpush.msra.mxu0 %v324
    %344 = vmatpush.msra.mxu0 %v323
    %345 = vmatpush.msra.mxu0 %v322
    %346 = vmatpush.msra.mxu0 %v321
    %347 = vmatpush.msra.mxu0 %v320
    %348 = vmatpush.msra.mxu0 %v319
    %349 = vmatpush.msra.mxu0 %v318
    %350 = vmatmul.f32.gmra.mxu0 %v316
    %v351 = vpop.f32.mrf.mxu0
    %v352 = vadd.f32 0.0, %v351
    %353 = vdwg.mxu0
    %v354 = vsub.f32 %v316, %v352
    %v355 = vmul.f32 %v354, %v354
    %356 = vmatpush.msra.mxu0 %v333
    %357 = vmatpush.msra.mxu0 %v332
    %358 = vmatpush.msra.mxu0 %v331
    %359 = vmatpush.msra.mxu0 %v330
    %360 = vmatpush.msra.mxu0 %v329
    %361 = vmatpush.msra.mxu0 %v328
    %362 = vmatpush.msra.mxu0 %v327
    %363 = vmatpush.msra.mxu0 %v326
    %364 = vmatpush.msra.mxu0 %v325
    %365 = vmatpush.msra.mxu0 %v324
    %366 = vmatpush.msra.mxu0 %v323
    %367 = vmatpush.msra.mxu0 %v322
    %368 = vmatpush.msra.mxu0 %v321
    %369 = vmatpush.msra.mxu0 %v320
    %370 = vmatpush.msra.mxu0 %v319
    %371 = vmatpush.msra.mxu0 %v318
    %372 = vmatmul.f32.gmra.mxu0 %v355
    %v373 = vpop.f32.mrf.mxu0
    %v374 = vadd.f32 1e-05, %v373
    %375 = vdwg.mxu0
    %v376 = vrsqrt.pop %v374
    %v377 = vmul.f32 %v376, %v374
    %v378 = vmul.f32 %v377, %v376
    %v379 = vmul.f32 0.5, %v378
    %v380 = vsub.f32 1.5, %v379
    %v381 = vmul.f32 %v376, %v380
    %vm382 = vweird.f32 %v374
    %vm383 = vweird.f32 %v376
    %vm384 = vmor %vm382, %vm383
    %v385 = vsel %vm384, %v376, %v381
    %v386 = vmul.f32 %v354, %v385
    %v387 = vld [vmem:[%s4] sm:$0x1]
    %v389 = vperm.slane %v387, 0
    %v391 = vmul.f32 %v386, %v389
    %v392 = vld [vmem:[%s5] sm:$0x1]
    %v394 = vperm.slane %v392, 0
    %v396 = vadd.f32 %v391, %v394
    %397 = vst [vmem:[#allocation10] sm:$0xf] %v396
    // Predicated region
    $region42: #{tpu_custom_call.1} parent=1 // pred_check
      _
    $region43: #{tpu_custom_call.1} parent=1 // pred_check_branch
      %399 = sbr.rel (0) target = $region45
    $region44: #{tpu_custom_call.1} parent=1 // pred_region
      %401 = vsyncadd [#allocation4], 0
      %s403 = sshll.u32 [#allocation10], 4
      %s404 = int_to_ptr.vmem [resolvable:$true] %s403
      %s405 = sshll.u32 %s6, 4
      %s406 = int_to_ptr.hbm [resolvable:$true] %s405
      %408 = dma.vmem_to_hbm [thread:$0]  %s404, 64, %s406, [#allocation4]
    $region45: #{tpu_custom_call.1} parent=1 // pred_fallthru
      _
    // Predicated region
    $region46: #{tpu_custom_call.1} parent=1 // pred_check
      _
    $region47: #{tpu_custom_call.1} parent=1 // pred_check_branch
      %410 = sbr.rel (0) target = $region49
    $region48: #{tpu_custom_call.1} parent=1 // pred_region
      %412 = dma.done [#allocation4], 64
    $region49: #{tpu_custom_call.1} parent=1 // pred_fallthru
      _
    %413 = vsyncpa [#allocation3], 1
    %414 = vsyncpa [#allocation6], 1
    %415 = vsyncpa [#allocation9], 1
    %416 = vsyncpa [#allocation4], 1

</llo_original>
